<compile_context>
chip_gen: v7x
topology: tpu7x:2x2x1
jax: 0.10.0
libtpu: 0.0.40
codegen_flags: <defaults>
</compile_context>

<pallas_src>
import functools

import jax
import jax.numpy as jnp
from jax.experimental import pallas as pl
from jax.experimental.pallas import tpu as pltpu


_VMEM_BUDGET = 24 << 20   # per-grid-step working-set budget (fits every gen)
_VMEM_LIMIT = 64 << 20    # scoped-VMEM limit (v5e default is only 16 MiB)


def _round_up(x, m):
    return -(-x // m) * m


def _choose_tile(n, c, itemsize, n_exits, vmem_budget):
    """Pick the batch-tile height (rows per grid step)."""
    sub = max(8, 32 // itemsize)          # sublane multiple of the native dtype
    n_sub = _round_up(n, sub)
    # Per-row VMEM footprint: double-buffered native logits block per exit
    # + f32 intermediates (f32 logits / exp / select) + int32 class iota.
    per_row = n_exits * 2 * c * itemsize + 16 * c * min(n_exits, 2) + 16
    rows_cap = max(sub, vmem_budget // per_row)

    if rows_cap >= n_sub and n_sub < 256:
        return n_sub                      # one full-extent tile covers the batch
    if rows_cap >= 128:
        # Multi-tile path: tn must be a multiple of 128 so the lane-dense
        # target block stays layout-legal; aim for >= 2 tiles so v7x's two
        # TensorCores both get work (no effect on single-TC v5e/v6e).
        return min(rows_cap // 128 * 128, _round_up(pl.cdiv(n_sub, 2), 128))
    # Very wide C: per-row footprint too large for 128-row tiles.
    # TODO(synk): flash-style online-LSE tiling over the class axis here.
    return max(sub, rows_cap // sub * sub)


def _branchy_ce_kernel(*refs, n_exits, tn, n_rows, lane_dense_tgt):
    """One grid step = one batch tile; sums CE over rows and fused exits."""
    logits_refs = refs[:n_exits]
    tgt_ref = refs[n_exits]
    out_ref = refs[n_exits + 1]
    c = logits_refs[0].shape[-1]

    # Target class ids as a (tn, 1) column (shared by every exit).
    if lane_dense_tgt:
        tgt_col = jnp.transpose(tgt_ref[...])          # (1, tn) -> (tn, 1), XLU
    else:
        tgt_col = tgt_ref[...]                         # (tn, 1) column layout

    # One-hot via iota compare + select (keep the MXU idle on purpose).
    class_ids = jax.lax.broadcasted_iota(jnp.int32, (tn, c), 1)
    onehot = class_ids == tgt_col                      # (tn, c) bool

    per_row = jnp.zeros((tn, 1), jnp.float32)
    for e in range(n_exits):                           # static unroll over exits
        # Native-dtype block load; f32 for reductions / transcendentals.
        # TODO(synk): keep max/select in bf16 on v6e/v7x (bf16 VPU) and only
        # upcast (x - m) before exp; full f32 kept here for v5e portability.
        x = logits_refs[e][...].astype(jnp.float32)    # (tn, c)
        m = jnp.max(x, axis=-1, keepdims=True)
        lse = m + jnp.log(jnp.sum(jnp.exp(x - m), axis=-1, keepdims=True))
        tgt_logit = jnp.sum(jnp.where(onehot, x, 0.0), axis=-1, keepdims=True)
        per_row = per_row + (lse - tgt_logit)

    if n_rows % tn != 0:
        # The last tile overhangs the true batch: those rows hold garbage
        # (the logits are NOT padded in HBM).  This mask must stay ahead of
        # the cross-row sum -- it is what keeps garbage/NaN rows out.
        rows = (jax.lax.broadcasted_iota(jnp.int32, (tn, 1), 0)
                + pl.program_id(0) * tn)
        per_row = jnp.where(rows < n_rows, per_row, 0.0)

    # Lane-dense (1, 8, 128) partial-sum block; tiny tile reduction + the
    # 1/N scaling happen in the wrapper.
    out_ref[...] = jnp.zeros((1, 8, 128), jnp.float32) + jnp.sum(per_row)


def _summed_cross_entropy(exits, target):
    """Un-normalized sum over batch rows AND exits of softmax cross-entropy.

    All `exits` must share one (N, C) shape and dtype; they are fused into a
    single pallas_call (one grid, targets loaded once per tile).
    """
    n, c = exits[0].shape
    n_exits = len(exits)
    itemsize = jnp.dtype(exits[0].dtype).itemsize

    tn = _choose_tile(n, c, itemsize, n_exits, _VMEM_BUDGET)
    num_tiles = pl.cdiv(n, tn)
    n_pad = num_tiles * tn
    lane_dense_tgt = (num_tiles == 1) or (tn % 128 == 0)

    # Only the tiny int32 target vector is padded (never the logits).
    tgt = target.astype(jnp.int32)
    if n_pad != n:
        tgt = jnp.pad(tgt, (0, n_pad - n))
    if lane_dense_tgt:
        tgt = tgt.reshape(1, n_pad)
        tgt_spec = pl.BlockSpec((1, tn), lambda i: (0, i))
    else:
        tgt = tgt.reshape(n_pad, 1)
        tgt_spec = pl.BlockSpec((tn, 1), lambda i: (i, 0))

    if tn < 128 and num_tiles > 1:
        # Wide-C fallback: shallow tiles -> deeper pipelining keeps HBM busy.
        logits_spec = pl.BlockSpec((tn, c), lambda i: (i, 0),
                                   pipeline_mode=pl.Buffered(3))
    else:
        logits_spec = pl.BlockSpec((tn, c), lambda i: (i, 0))

    kernel = functools.partial(_branchy_ce_kernel, n_exits=n_exits, tn=tn,
                               n_rows=n, lane_dense_tgt=lane_dense_tgt)

    partial_sums = pl.pallas_call(
        kernel,
        out_shape=jax.ShapeDtypeStruct((num_tiles, 8, 128), jnp.float32),
        grid_spec=pltpu.PrefetchScalarGridSpec(
            num_scalar_prefetch=0,
            grid=(num_tiles,),
            in_specs=[logits_spec] * n_exits + [tgt_spec],
            out_specs=pl.BlockSpec((1, 8, 128), lambda i: (i, 0, 0)),
        ),
        compiler_params=pltpu.CompilerParams(
            # Tiles are independent -> v7x's two TensorCores split them.
            dimension_semantics=("parallel",),
            vmem_limit_bytes=_VMEM_LIMIT,
        ),
    )(*exits, tgt)

    return jnp.sum(partial_sums[:, 0, 0])


def branchy_net_loss(pred, target):
    """pred: (N, C) array or list/tuple of such arrays (one per exit); a
    stacked (E, N, C) array is also accepted.  target: (N,) integer class
    ids.  Returns the scalar sum of per-exit mean cross-entropies (f32)."""
    if isinstance(pred, (list, tuple)):
        exits = list(pred)
    elif pred.ndim == 3:
        # Stacked input (not produced by the reference module): unstack.
        exits = [pred[i] for i in range(pred.shape[0])]
    else:
        exits = [pred]

    first = exits[0]
    fusable = all(e.shape == first.shape and e.dtype == first.dtype
                  for e in exits)
    if fusable:
        return _summed_cross_entropy(exits, target) * (1.0 / first.shape[0])

    total = jnp.float32(0.0)
    for e in exits:
        total = total + _summed_cross_entropy([e], target) * (1.0 / e.shape[0])
    return total


def _reference_loss(pred_list, target):
    """Pure-JAX reference (mirrors torch F.cross_entropy, mean reduction)."""
    total = 0.0
    for p in pred_list:
        logp = jax.nn.log_softmax(p.astype(jnp.float32), axis=-1)
        nll = -jnp.take_along_axis(logp, target[:, None].astype(jnp.int32),
                                   axis=-1)[:, 0]
        total = total + jnp.mean(nll)
    return total


if __name__ == "__main__":
    key = jax.random.PRNGKey(0)
    loss_fn = jax.jit(branchy_net_loss)

    # Multi-exit case: 3 bf16 exits fused into one pallas_call, batch not a
    # sublane multiple, class count not a lane multiple (single tile).
    E, N, C = 3, 10, 40
    keys = jax.random.split(key, E + 3)
    exits_bf16 = [jax.random.normal(keys[i], (N, C), dtype=jnp.float32)
                  .astype(jnp.bfloat16) for i in range(E)]
    target = jax.random.randint(keys[E], (N,), 0, C, dtype=jnp.int32)

    loss_multi = jax.block_until_ready(loss_fn(exits_bf16, target))
    ref_multi = _reference_loss(exits_bf16, target)
    assert jnp.allclose(loss_multi, ref_multi, atol=1e-4, rtol=1e-4), (
        loss_multi, ref_multi)

    # Single-exit f32 case exercising the multi-tile path: 2 tiles of 256
    # rows, lane-dense targets, last tile overhanging the true batch.
    N2, C2 = 300, 257
    single = jax.random.normal(keys[E + 1], (N2, C2), dtype=jnp.float32)
    target2 = jax.random.randint(keys[E + 2], (N2,), 0, C2, dtype=jnp.int32)

    loss_single = jax.block_until_ready(loss_fn(single, target2))
    ref_single = _reference_loss([single], target2)
    assert jnp.allclose(loss_single, ref_single, atol=1e-4, rtol=1e-4), (
        loss_single, ref_single)

    print("KERNEL_OK")
</pallas_src>

<mosaic_0001>
module attributes {stable_mosaic.version = 11 : i64} {
  func.func @_branchy_ce_kernel(%arg0: i32, %arg1: memref<16x40xbf16, #tpu.memory_space<vmem>>, %arg2: memref<16x40xbf16, #tpu.memory_space<vmem>>, %arg3: memref<16x40xbf16, #tpu.memory_space<vmem>>, %arg4: memref<1x16xi32, #tpu.memory_space<vmem>>, %arg5: memref<1x8x128xf32, #tpu.memory_space<vmem>>) attributes {dimension_semantics = [#tpu.dimension_semantics<parallel>], iteration_bounds = array<i64: 1>, scalar_prefetch = 0 : i64, scratch_operands = 0 : i64, tpu.core_type = #tpu.core_type<tc>, window_params = [{transform_indices = @transform_0, window_bounds = array<i64: 16, 40>}, {transform_indices = @transform_1, window_bounds = array<i64: 16, 40>}, {transform_indices = @transform_2, window_bounds = array<i64: 16, 40>}, {transform_indices = @transform_3, window_bounds = array<i64: 1, 16>}, {transform_indices = @transform_4, window_bounds = array<i64: 1, 8, 128>}]} {
    %c0 = arith.constant 0 : index
    %c0_0 = arith.constant 0 : index
    %0 = vector.load %arg4[%c0, %c0_0] : memref<1x16xi32, #tpu.memory_space<vmem>>, vector<1x16xi32>
    %1 = tpu.transpose %0, [1, 0] : vector<1x16xi32> -> vector<16x1xi32>
    %2 = tpu.iota {dimensions = array<i32: 1>} : vector<16x40xi32>
    %3 = vector.broadcast %1 : vector<16x1xi32> to vector<16x40xi32>
    %4 = arith.cmpi eq, %2, %3 : vector<16x40xi32>
    %cst = arith.constant 0.000000e+00 : f32
    %5 = vector.broadcast %cst : f32 to vector<16x1xf32>
    %c0_1 = arith.constant 0 : index
    %c0_2 = arith.constant 0 : index
    %6 = vector.load %arg1[%c0_1, %c0_2] : memref<16x40xbf16, #tpu.memory_space<vmem>>, vector<16x40xbf16>
    %7 = arith.extf %6 : vector<16x40xbf16> to vector<16x40xf32>
    %cst_3 = arith.constant dense<0xFF800000> : vector<16xf32>
    %8 = vector.multi_reduction <maximumf>, %7, %cst_3 [1] : vector<16x40xf32> to vector<16xf32>
    %9 = vector.shape_cast %8 : vector<16xf32> to vector<16x1xf32>
    %10 = vector.broadcast %9 : vector<16x1xf32> to vector<16x40xf32>
    %11 = arith.subf %7, %10 : vector<16x40xf32>
    %12 = math.exp %11 : vector<16x40xf32>
    %cst_4 = arith.constant dense<0.000000e+00> : vector<16xf32>
    %13 = vector.multi_reduction <add>, %12, %cst_4 [1] : vector<16x40xf32> to vector<16xf32>
    %14 = vector.shape_cast %13 : vector<16xf32> to vector<16x1xf32>
    %15 = math.log %14 : vector<16x1xf32>
    %16 = arith.addf %9, %15 : vector<16x1xf32>
    %cst_5 = arith.constant 0.000000e+00 : f32
    %17 = vector.broadcast %cst_5 : f32 to vector<16x40xf32>
    %18 = arith.select %4, %7, %17 : vector<16x40xi1>, vector<16x40xf32>
    %cst_6 = arith.constant dense<0.000000e+00> : vector<16xf32>
    %19 = vector.multi_reduction <add>, %18, %cst_6 [1] : vector<16x40xf32> to vector<16xf32>
    %20 = vector.shape_cast %19 : vector<16xf32> to vector<16x1xf32>
    %21 = arith.subf %16, %20 : vector<16x1xf32>
    %22 = arith.addf %5, %21 : vector<16x1xf32>
    %c0_7 = arith.constant 0 : index
    %c0_8 = arith.constant 0 : index
    %23 = vector.load %arg2[%c0_7, %c0_8] : memref<16x40xbf16, #tpu.memory_space<vmem>>, vector<16x40xbf16>
    %24 = arith.extf %23 : vector<16x40xbf16> to vector<16x40xf32>
    %cst_9 = arith.constant dense<0xFF800000> : vector<16xf32>
    %25 = vector.multi_reduction <maximumf>, %24, %cst_9 [1] : vector<16x40xf32> to vector<16xf32>
    %26 = vector.shape_cast %25 : vector<16xf32> to vector<16x1xf32>
    %27 = vector.broadcast %26 : vector<16x1xf32> to vector<16x40xf32>
    %28 = arith.subf %24, %27 : vector<16x40xf32>
    %29 = math.exp %28 : vector<16x40xf32>
    %cst_10 = arith.constant dense<0.000000e+00> : vector<16xf32>
    %30 = vector.multi_reduction <add>, %29, %cst_10 [1] : vector<16x40xf32> to vector<16xf32>
    %31 = vector.shape_cast %30 : vector<16xf32> to vector<16x1xf32>
    %32 = math.log %31 : vector<16x1xf32>
    %33 = arith.addf %26, %32 : vector<16x1xf32>
    %cst_11 = arith.constant 0.000000e+00 : f32
    %34 = vector.broadcast %cst_11 : f32 to vector<16x40xf32>
    %35 = arith.select %4, %24, %34 : vector<16x40xi1>, vector<16x40xf32>
    %cst_12 = arith.constant dense<0.000000e+00> : vector<16xf32>
    %36 = vector.multi_reduction <add>, %35, %cst_12 [1] : vector<16x40xf32> to vector<16xf32>
    %37 = vector.shape_cast %36 : vector<16xf32> to vector<16x1xf32>
    %38 = arith.subf %33, %37 : vector<16x1xf32>
    %39 = arith.addf %22, %38 : vector<16x1xf32>
    %c0_13 = arith.constant 0 : index
    %c0_14 = arith.constant 0 : index
    %40 = vector.load %arg3[%c0_13, %c0_14] : memref<16x40xbf16, #tpu.memory_space<vmem>>, vector<16x40xbf16>
    %41 = arith.extf %40 : vector<16x40xbf16> to vector<16x40xf32>
    %cst_15 = arith.constant dense<0xFF800000> : vector<16xf32>
    %42 = vector.multi_reduction <maximumf>, %41, %cst_15 [1] : vector<16x40xf32> to vector<16xf32>
    %43 = vector.shape_cast %42 : vector<16xf32> to vector<16x1xf32>
    %44 = vector.broadcast %43 : vector<16x1xf32> to vector<16x40xf32>
    %45 = arith.subf %41, %44 : vector<16x40xf32>
    %46 = math.exp %45 : vector<16x40xf32>
    %cst_16 = arith.constant dense<0.000000e+00> : vector<16xf32>
    %47 = vector.multi_reduction <add>, %46, %cst_16 [1] : vector<16x40xf32> to vector<16xf32>
    %48 = vector.shape_cast %47 : vector<16xf32> to vector<16x1xf32>
    %49 = math.log %48 : vector<16x1xf32>
    %50 = arith.addf %43, %49 : vector<16x1xf32>
    %cst_17 = arith.constant 0.000000e+00 : f32
    %51 = vector.broadcast %cst_17 : f32 to vector<16x40xf32>
    %52 = arith.select %4, %41, %51 : vector<16x40xi1>, vector<16x40xf32>
    %cst_18 = arith.constant dense<0.000000e+00> : vector<16xf32>
    %53 = vector.multi_reduction <add>, %52, %cst_18 [1] : vector<16x40xf32> to vector<16xf32>
    %54 = vector.shape_cast %53 : vector<16xf32> to vector<16x1xf32>
    %55 = arith.subf %50, %54 : vector<16x1xf32>
    %56 = arith.addf %39, %55 : vector<16x1xf32>
    %57 = tpu.iota {dimensions = array<i32: 0>} : vector<16x1xi32>
    %c16_i32 = arith.constant 16 : i32
    %58 = arith.muli %arg0, %c16_i32 : i32
    %59 = vector.broadcast %58 : i32 to vector<16x1xi32>
    %60 = arith.addi %57, %59 : vector<16x1xi32>
    %c10_i32 = arith.constant 10 : i32
    %61 = vector.broadcast %c10_i32 : i32 to vector<16x1xi32>
    %62 = arith.cmpi slt, %60, %61 : vector<16x1xi32>
    %cst_19 = arith.constant 0.000000e+00 : f32
    %63 = vector.broadcast %cst_19 : f32 to vector<16x1xf32>
    %64 = arith.select %62, %56, %63 : vector<16x1xi1>, vector<16x1xf32>
    %cst_20 = arith.constant 0.000000e+00 : f32
    %65 = vector.broadcast %cst_20 : f32 to vector<1x8x128xf32>
    %66 = vector.shape_cast %64 : vector<16x1xf32> to vector<1x16x1xf32>
    %cst_21 = arith.constant dense<0.000000e+00> : vector<1xf32>
    %67 = vector.multi_reduction <add>, %66, %cst_21 [1, 2] : vector<1x16x1xf32> to vector<1xf32>
    %68 = vector.shape_cast %67 : vector<1xf32> to vector<1x1x1xf32>
    %69 = vector.extract %68[0, 0, 0] : f32 from vector<1x1x1xf32>
    %70 = vector.broadcast %69 : f32 to vector<1x8x128xf32>
    %71 = arith.addf %65, %70 : vector<1x8x128xf32>
    %c0_22 = arith.constant 0 : index
    %c0_23 = arith.constant 0 : index
    %c0_24 = arith.constant 0 : index
    %72 = vector.load %arg5[%c0_22, %c0_23, %c0_24] : memref<1x8x128xf32, #tpu.memory_space<vmem>>, vector<1x8x128xf32>
    tpu.vector_store %arg5[%c0_22, %c0_23, %c0_24], %71 {strides = array<i32>} : memref<1x8x128xf32, #tpu.memory_space<vmem>>, vector<1x8x128xf32>,
    return
  }
  func.func @transform_0(%arg0: i32) -> (i32, i32) {
    %c0_i32 = arith.constant 0 : i32
    %c0_i32_0 = arith.constant 0 : i32
    return %arg0, %c0_i32 : i32, i32
  }
  func.func @transform_1(%arg0: i32) -> (i32, i32) {
    %c0_i32 = arith.constant 0 : i32
    %c0_i32_0 = arith.constant 0 : i32
    return %arg0, %c0_i32 : i32, i32
  }
  func.func @transform_2(%arg0: i32) -> (i32, i32) {
    %c0_i32 = arith.constant 0 : i32
    %c0_i32_0 = arith.constant 0 : i32
    return %arg0, %c0_i32 : i32, i32
  }
  func.func @transform_3(%arg0: i32) -> (i32, i32) {
    %c0_i32 = arith.constant 0 : i32
    %c0_i32_0 = arith.constant 0 : i32
    return %c0_i32, %arg0 : i32, i32
  }
  func.func @transform_4(%arg0: i32) -> (i32, i32, i32) {
    %c0_i32 = arith.constant 0 : i32
    %c0_i32_0 = arith.constant 0 : i32
    %c0_i32_1 = arith.constant 0 : i32
    return %arg0, %c0_i32, %c0_i32_0 : i32, i32, i32
  }
}

</mosaic_0001>

<llo_original>
// kernel: branchy_net_loss.1
$region0: #{branchy_net_loss.1}
  #allocation0 [shape = 'u32[]', space=smem, size = 0x4, offset = 0x4, fixed_abs, tag = 'smem constant byte address 0x4 - core index']
  #allocation1 [shape = 'u32[144,128]{1,0:T(1,128)}', space=vmem, size = 0x12000, scoped, tag = 'internal scratch']
  %s0 = inlined_call_operand.hbm [shape: bf16[10,40], index: 0, kind: input, shape index: {}]
  %s1 = inlined_call_operand.hbm [shape: bf16[10,40], index: 1, kind: input, shape index: {}]
  %s2 = inlined_call_operand.hbm [shape: bf16[10,40], index: 2, kind: input, shape index: {}]
  %s3 = inlined_call_operand.hbm [shape: s32[1,16], index: 3, kind: input, shape index: {}]
  %s4 = inlined_call_operand.hbm [shape: f32[1,8,128], index: 4, kind: output, shape index: {}]
  %s5 = sld [smem:[#allocation0]]
  $region42: #{branchy_net_loss.1} parent=0
    _
  %s7 = ssub.s32 1, %s5
  %s8 = scalar_select 0, %s7, %s5
  $region1: #{branchy_net_loss.1} parent=0
    #allocation2 [shape = 'u8[4096]{0}', space=vmem, size = 0x1000, scoped, tag = 'input window, operand 0, single buffered']
    #allocation3 [shape = 's32[1]{0}', space=sflag, size = 0x4, scoped, tag = 'scoped memory for branchy_net_loss.1']
    #allocation4 [shape = 's32[1]{0}', space=sflag, size = 0x4, scoped, tag = 'scoped memory for branchy_net_loss.1']
    #allocation5 [shape = 'u8[4096]{0}', space=vmem, size = 0x1000, scoped, tag = 'input window, operand 1, single buffered']
    #allocation6 [shape = 's32[1]{0}', space=sflag, size = 0x4, scoped, tag = 'scoped memory for branchy_net_loss.1']
    #allocation7 [shape = 'u8[4096]{0}', space=vmem, size = 0x1000, scoped, tag = 'input window, operand 2, single buffered']
    #allocation8 [shape = 'u8[512]{0}', space=vmem, size = 0x400, scoped, tag = 'input window, operand 3, single buffered']
    #allocation9 [shape = 's32[1]{0}', space=sflag, size = 0x4, scoped, tag = 'scoped memory for branchy_net_loss.1']
    #allocation10 [shape = 'u8[4096]{0}', space=vmem, size = 0x1000, scoped, tag = 'output window, operand 0, single buffered']
    %9 = vsyncpa [#allocation3], 0
    %10 = vsyncpa [#allocation6], 0
    %11 = vsyncpa [#allocation9], 0
    %12 = vsyncpa [#allocation4], 0
    // Predicated region
    $region2: #{branchy_net_loss.1} parent=1 // pred_check
      _
    $region3: #{branchy_net_loss.1} parent=1 // pred_check_branch
      %14 = sbr.rel (0) target = $region5
    $region4: #{branchy_net_loss.1} parent=1 // pred_region
      %s16 = ssub.s32 128, 128
      %17 = vsyncadd [#allocation3], %s16
      %s18 = sshll.u32 [#allocation2], 4
      %s19 = int_to_ptr.vmem [resolvable:$true] %s18
      %24 = dma.hbm_to_vmem [thread:$0]  %s0, 128, %s19, [#allocation3], 64, 64, 4
    $region5: #{branchy_net_loss.1} parent=1 // pred_fallthru
      _
    // Predicated region
    $region6: #{branchy_net_loss.1} parent=1 // pred_check
      _
    $region7: #{branchy_net_loss.1} parent=1 // pred_check_branch
      %26 = sbr.rel (0) target = $region9
    $region8: #{branchy_net_loss.1} parent=1 // pred_region
      %s28 = ssub.s32 128, 128
      %29 = vsyncadd [#allocation6], %s28
      %s30 = sshll.u32 [#allocation5], 4
      %s31 = int_to_ptr.vmem [resolvable:$true] %s30
      %36 = dma.hbm_to_vmem [thread:$0]  %s1, 128, %s31, [#allocation6], 64, 64, 4
    $region9: #{branchy_net_loss.1} parent=1 // pred_fallthru
      _
    // Predicated region
    $region10: #{branchy_net_loss.1} parent=1 // pred_check
      _
    $region11: #{branchy_net_loss.1} parent=1 // pred_check_branch
      %38 = sbr.rel (0) target = $region13
    $region12: #{branchy_net_loss.1} parent=1 // pred_region
      %s40 = ssub.s32 128, 128
      %41 = vsyncadd [#allocation6], %s40
      %s42 = sshll.u32 [#allocation7], 4
      %s43 = int_to_ptr.vmem [resolvable:$true] %s42
      %48 = dma.hbm_to_vmem [thread:$0]  %s2, 128, %s43, [#allocation6], 64, 64, 4
    $region13: #{branchy_net_loss.1} parent=1 // pred_fallthru
      _
    // Predicated region
    $region14: #{branchy_net_loss.1} parent=1 // pred_check
      _
    $region15: #{branchy_net_loss.1} parent=1 // pred_check_branch
      %50 = sbr.rel (0) target = $region17
    $region16: #{branchy_net_loss.1} parent=1 // pred_region
      %s52 = ssub.s32 16, 16
      %53 = vsyncadd [#allocation9], %s52
      %s55 = sshll.u32 [#allocation8], 4
      %s56 = int_to_ptr.vmem [resolvable:$true] %s55
      %58 = dma.hbm_to_vmem [thread:$0]  %s3, 16, %s56, [#allocation9]
    $region17: #{branchy_net_loss.1} parent=1 // pred_fallthru
      _
    // Predicated region
    $region18: #{branchy_net_loss.1} parent=1 // pred_check
      _
    $region19: #{branchy_net_loss.1} parent=1 // pred_check_branch
      %60 = sbr.rel (0) target = $region21
    $region20: #{branchy_net_loss.1} parent=1 // pred_region
      %61 = dma.done [#allocation3], 128
    $region21: #{branchy_net_loss.1} parent=1 // pred_fallthru
      _
    // Predicated region
    $region22: #{branchy_net_loss.1} parent=1 // pred_check
      _
    $region23: #{branchy_net_loss.1} parent=1 // pred_check_branch
      %63 = sbr.rel (0) target = $region25
    $region24: #{branchy_net_loss.1} parent=1 // pred_region
      %64 = dma.done [#allocation6], 128
    $region25: #{branchy_net_loss.1} parent=1 // pred_fallthru
      _
    // Predicated region
    $region26: #{branchy_net_loss.1} parent=1 // pred_check
      _
    $region27: #{branchy_net_loss.1} parent=1 // pred_check_branch
      %66 = sbr.rel (0) target = $region29
    $region28: #{branchy_net_loss.1} parent=1 // pred_region
      %67 = dma.done [#allocation6], 128
    $region29: #{branchy_net_loss.1} parent=1 // pred_fallthru
      _
    // Predicated region
    $region30: #{branchy_net_loss.1} parent=1 // pred_check
      _
    $region31: #{branchy_net_loss.1} parent=1 // pred_check_branch
      %69 = sbr.rel (0) target = $region33
    $region32: #{branchy_net_loss.1} parent=1 // pred_region
      %70 = dma.done [#allocation9], 16
    $region33: #{branchy_net_loss.1} parent=1 // pred_fallthru
      _
    %v71 = vld [vmem:[#allocation8] sm:$0x1]
    %72 = vxpose.xlu0.b32.start [1/16] %v71, 128
    %73 = vxpose.xlu0.b32.cont [2/16] 0, 128
    %74 = vxpose.xlu0.b32.cont [3/16] 0, 128
    %75 = vxpose.xlu0.b32.cont [4/16] 0, 128
    %76 = vxpose.xlu0.b32.cont [5/16] 0, 128
    %77 = vxpose.xlu0.b32.cont [6/16] 0, 128
    %78 = vxpose.xlu0.b32.cont [7/16] 0, 128
    %79 = vxpose.xlu0.b32.cont [8/16] 0, 128
    %80 = vxpose.xlu0.b32.cont [9/16] 0, 128
    %81 = vxpose.xlu0.b32.cont [10/16] 0, 128
    %82 = vxpose.xlu0.b32.cont [11/16] 0, 128
    %83 = vxpose.xlu0.b32.cont [12/16] 0, 128
    %84 = vxpose.xlu0.b32.cont [13/16] 0, 128
    %85 = vxpose.xlu0.b32.cont [14/16] 0, 128
    %86 = vxpose.xlu0.b32.cont [15/16] 0, 128
    %87 = vxpose.xlu0.b32.end [16/16] 0, 128
    %v88 = vpop.trf.xlu0
    %v89 = vpop.trf.xlu0
    %v90 = vpop.trf.xlu0
    %v91 = vpop.trf.xlu0
    %v92 = vpop.trf.xlu0
    %v93 = vpop.trf.xlu0
    %v94 = vpop.trf.xlu0
    %v95 = vpop.trf.xlu0
    %v96 = vpop.trf.xlu0
    %v97 = vpop.trf.xlu0
    %v98 = vpop.trf.xlu0
    %v99 = vpop.trf.xlu0
    %v100 = vpop.trf.xlu0
    %v101 = vpop.trf.xlu0
    %v102 = vpop.trf.xlu0
    %v103 = vpop.trf.xlu0
    %v104 = vlaneseq
    %v105 = vand.u32 %v104, 127
    %106 = vset.pattern.permute.xlu0 0
    %107 = vperm.xlu0 %106, %v88
    %v108 = vpop.permute.xlu0 %107
    %109 = vset.pattern.permute.xlu0 0
    %110 = vperm.xlu0 %109, %v89
    %v111 = vpop.permute.xlu0 %110
    %vm112 = vcmp.eq.s32.totalorder %v105, %v108
    %vm113 = vcmp.eq.s32.totalorder %v105, %v111
    %v114 = vld [vmem:[#allocation2] sm:$0xf]
    %v115 = vld [vmem:[#allocation2 + $0x4] sm:$0xf]
    %v116 = vunpack.c.l.bf16 %v114
    %v117 = vunpack.c.l.bf16 %v115
    %vm118 = vcmask 326656
    %v119 = vsel %vm118, %v116, -inf
    %120 = vmax.xlane.f32.xlu0 %v119
    %v121 = vpop.xlane.xlu0 %120
    %v122 = vsel %vm118, %v117, -inf
    %123 = vmax.xlane.f32.xlu0 %v122
    %v124 = vpop.xlane.xlu0 %123
    %v125 = vsub.f32 %v116, %v121
    %v126 = vsub.f32 %v117, %v124
    %v127 = vmul.f32 %v125, 1.442695
    %v128 = vpow.pop %v127
    %v129 = vmul.f32 %v126, 1.442695
    %v130 = vpow.pop %v129
    %v131 = vsel %vm118, %v128, 0.0
    %132 = vadd.xlane.f32.xlu0 %v131
    %v133 = vpop.xlane.xlu0 %132
    %v134 = vsel %vm118, %v130, 0.0
    %135 = vadd.xlane.f32.xlu0 %v134
    %v136 = vpop.xlane.xlu0 %135
    %v137 = vlog2.pop %v133
    %v138 = vmul.f32 %v137, 0.6931472
    %v139 = vlog2.pop %v136
    %v140 = vmul.f32 %v139, 0.6931472
    %v141 = vadd.f32 %v121, %v138
    %v142 = vadd.f32 %v124, %v140
    %v143 = vsel %vm112, %v116, 0.0
    %v144 = vsel %vm113, %v117, 0.0
    %v145 = vsel %vm118, %v143, 0.0
    %146 = vadd.xlane.f32.xlu0 %v145
    %v147 = vpop.xlane.xlu0 %146
    %v148 = vsel %vm118, %v144, 0.0
    %149 = vadd.xlane.f32.xlu0 %v148
    %v150 = vpop.xlane.xlu0 %149
    %v151 = vsub.f32 %v141, %v147
    %v152 = vsub.f32 %v142, %v150
    %v153 = vadd.f32 %v151, 0.0
    %v154 = vadd.f32 %v152, 0.0
    %v155 = vld [vmem:[#allocation5] sm:$0xf]
    %v156 = vld [vmem:[#allocation5 + $0x4] sm:$0xf]
    %v157 = vunpack.c.l.bf16 %v155
    %v158 = vunpack.c.l.bf16 %v156
    %v159 = vsel %vm118, %v157, -inf
    %160 = vmax.xlane.f32.xlu0 %v159
    %v161 = vpop.xlane.xlu0 %160
    %v162 = vsel %vm118, %v158, -inf
    %163 = vmax.xlane.f32.xlu0 %v162
    %v164 = vpop.xlane.xlu0 %163
    %v165 = vsub.f32 %v157, %v161
    %v166 = vsub.f32 %v158, %v164
    %v167 = vmul.f32 %v165, 1.442695
    %v168 = vpow.pop %v167
    %v169 = vmul.f32 %v166, 1.442695
    %v170 = vpow.pop %v169
    %v171 = vsel %vm118, %v168, 0.0
    %172 = vadd.xlane.f32.xlu0 %v171
    %v173 = vpop.xlane.xlu0 %172
    %v174 = vsel %vm118, %v170, 0.0
    %175 = vadd.xlane.f32.xlu0 %v174
    %v176 = vpop.xlane.xlu0 %175
    %v177 = vlog2.pop %v173
    %v178 = vmul.f32 %v177, 0.6931472
    %v179 = vlog2.pop %v176
    %v180 = vmul.f32 %v179, 0.6931472
    %v181 = vadd.f32 %v161, %v178
    %v182 = vadd.f32 %v164, %v180
    %v183 = vsel %vm112, %v157, 0.0
    %v184 = vsel %vm113, %v158, 0.0
    %v185 = vsel %vm118, %v183, 0.0
    %186 = vadd.xlane.f32.xlu0 %v185
    %v187 = vpop.xlane.xlu0 %186
    %v188 = vsel %vm118, %v184, 0.0
    %189 = vadd.xlane.f32.xlu0 %v188
    %v190 = vpop.xlane.xlu0 %189
    %v191 = vsub.f32 %v181, %v187
    %v192 = vsub.f32 %v182, %v190
    %v193 = vadd.f32 %v153, %v191
    %v194 = vadd.f32 %v154, %v192
    %v195 = vld [vmem:[#allocation7] sm:$0xf]
    %v196 = vld [vmem:[#allocation7 + $0x4] sm:$0xf]
    %v197 = vunpack.c.l.bf16 %v195
    %v198 = vunpack.c.l.bf16 %v196
    %v199 = vsel %vm118, %v197, -inf
    %200 = vmax.xlane.f32.xlu0 %v199
    %v201 = vpop.xlane.xlu0 %200
    %v202 = vsel %vm118, %v198, -inf
    %203 = vmax.xlane.f32.xlu0 %v202
    %v204 = vpop.xlane.xlu0 %203
    %v205 = vsub.f32 %v197, %v201
    %v206 = vsub.f32 %v198, %v204
    %v207 = vmul.f32 %v205, 1.442695
    %v208 = vpow.pop %v207
    %v209 = vmul.f32 %v206, 1.442695
    %v210 = vpow.pop %v209
    %v211 = vsel %vm118, %v208, 0.0
    %212 = vadd.xlane.f32.xlu0 %v211
    %v213 = vpop.xlane.xlu0 %212
    %v214 = vsel %vm118, %v210, 0.0
    %215 = vadd.xlane.f32.xlu0 %v214
    %v216 = vpop.xlane.xlu0 %215
    %v217 = vlog2.pop %v213
    %v218 = vmul.f32 %v217, 0.6931472
    %v219 = vlog2.pop %v216
    %v220 = vmul.f32 %v219, 0.6931472
    %v221 = vadd.f32 %v201, %v218
    %v222 = vadd.f32 %v204, %v220
    %v223 = vsel %vm112, %v197, 0.0
    %v224 = vsel %vm113, %v198, 0.0
    %v225 = vsel %vm118, %v223, 0.0
    %226 = vadd.xlane.f32.xlu0 %v225
    %v227 = vpop.xlane.xlu0 %226
    %v228 = vsel %vm118, %v224, 0.0
    %229 = vadd.xlane.f32.xlu0 %v228
    %v230 = vpop.xlane.xlu0 %229
    %v231 = vsub.f32 %v221, %v227
    %v232 = vsub.f32 %v222, %v230
    %v233 = vadd.f32 %v193, %v231
    %v234 = vadd.f32 %v194, %v232
    %v235 = vlaneseq
    %v236 = vshrl.u32 %v235, 7
    %v237 = vadd.s32 %v236, 8
    %s238 = smul.u32 0, 16
    %v239 = vstv %s238
    %v240 = vadd.s32 %v236, %v239
    %v241 = vadd.s32 %v237, %v239
    %vm242 = vcmp.lt.s32.totalorder %v240, 10
    %vm243 = vcmp.lt.s32.totalorder %v241, 10
    %v244 = vsel %vm242, %v233, 0.0
    %v245 = vsel %vm243, %v234, 0.0
    %vm246 = vcmask 7168
    %v247 = vsel %vm246, %v244, 0.0
    %v248 = vsel %vm246, %v245, 0.0
    %v249 = vadd.f32 %v247, %v248
    %250 = vadd.xlane.f32.xlu0 %v249
    %v251 = vpop.xlane.xlu0 %250
    %v252 = vrot.slane %v251, 4
    %v253 = vadd.f32 %v251, %v252
    %v254 = vrot.slane %v253, 2
    %v255 = vadd.f32 %v253, %v254
    %v256 = vrot.slane %v255, 1
    %v257 = vadd.f32 %v255, %v256
    %s258 = vtos %v257
    %v259 = vstv %s258
    %v260 = vadd.f32 %v259, 0.0
    %261 = vst [vmem:[#allocation10] sm:$0xff] %v260
    // Predicated region
    $region34: #{branchy_net_loss.1} parent=1 // pred_check
      _
    $region35: #{branchy_net_loss.1} parent=1 // pred_check_branch
      %263 = sbr.rel (0) target = $region37
    $region36: #{branchy_net_loss.1} parent=1 // pred_region
      %s265 = ssub.s32 128, 128
      %266 = vsyncadd [#allocation4], %s265
      %s268 = sshll.u32 [#allocation10], 4
      %s269 = int_to_ptr.vmem [resolvable:$true] %s268
      %271 = dma.vmem_to_hbm [thread:$0]  %s269, 128, %s4, [#allocation4]
    $region37: #{branchy_net_loss.1} parent=1 // pred_fallthru
      _
    // Predicated region
    $region38: #{branchy_net_loss.1} parent=1 // pred_check
      _
    $region39: #{branchy_net_loss.1} parent=1 // pred_check_branch
      %273 = sbr.rel (0) target = $region41
    $region40: #{branchy_net_loss.1} parent=1 // pred_region
      %274 = dma.done [#allocation4], 128
    $region41: #{branchy_net_loss.1} parent=1 // pred_fallthru
      _
    %275 = vsyncpa [#allocation3], 1
    %276 = vsyncpa [#allocation6], 1
    %277 = vsyncpa [#allocation9], 1
    %278 = vsyncpa [#allocation4], 1

</llo_original>
